<compile_context>
chip_gen: v6e
topology: v6e:2x2x1
jax: 0.10.0
libtpu: 0.0.40
codegen_flags: <defaults>
</compile_context>

<pallas_src>
import functools
import math

import numpy as np
import jax
import jax.numpy as jnp
from jax import lax
from jax.experimental import pallas as pl
from jax.experimental.pallas import tpu as pltpu

ITERATIONS = 8       # "iterations" hyper-parameter of the module (>= 2)
GAMMA = 0.98


def reinforced_loss_kernel(ts_ref, packed_ref, loss_ref, *, V, K, gamma):
    """packed_ref: (2T+3, B, C) f32
         row 0        : final output logits            (B, C)
         rows 1..T    : per-timestep classifications   (T, B, C)
         rows T+1..2T : values, zero-padded over C     (T, B, C)
         row 2T+1     : Categorical logits at [0, :K]
         row 2T+2     : one-hot labels                 (B, C)
       ts_ref: (1,) int32 in SMEM (timestamp, drawn in [1, T-1])."""
    R, B, C = packed_ref.shape
    T = (R - 3) // 2

    packed = packed_ref[...]                         # (2T+3, B, C)
    logits = packed[0:T + 1]                         # (T+1, B, C)
    vals = packed[T + 1:2 * T + 1]                   # (T, B, C) zero-padded values
    dist = packed[2 * T + 1, 0:1, 0:K]               # (1, K) Categorical logits
    onehot = packed[2 * T + 2]                       # (B, C) one-hot labels

    # ---- fused cross-entropy for the final output (row 0) and every timestep
    m = jnp.max(logits, axis=-1, keepdims=True)                       # (T+1,B,1)
    lse = m + jnp.log(jnp.sum(jnp.exp(logits - m), axis=-1, keepdims=True))
    picked = jnp.sum(logits * onehot[None, :, :], axis=-1, keepdims=True)
    ce_all = jnp.mean(lse - picked, axis=1, keepdims=True)             # (T+1,1,1)

    ce_out = ce_all[0]                       # (1,1) CE of the final classifier output
    ce_prev = ce_all[0:T]                    # row t = CE(cls[t-1]) for t>=1 (row 0 masked)
    ce_cur = ce_all[1:T + 1]                 # row t = CE(cls[t])

    # ---- rewards: r[0] = 0 ; r[t] = gamma^(iterations - t) * (CE_{t-1} - CE_t)
    tidx = lax.broadcasted_iota(jnp.int32, (T, 1, 1), 0)
    gp = jnp.exp((T - tidx).astype(jnp.float32) * float(math.log(gamma)))
    rewards = jnp.where(tidx >= 1, gp * (ce_prev - ce_cur), 0.0)       # (T,1,1)

    # ---- per-timestep value means (values were zero-padded from V to C lanes)
    vmean = jnp.sum(jnp.sum(vals, axis=2, keepdims=True), axis=1, keepdims=True)
    vmean = vmean * float(1.0 / (B * V))                               # (T,1,1)

    # ---- [timestamp:] slice as a mask over timesteps (ts in [1, T-1] => n_sel >= 1)
    ts = ts_ref[0]
    sel = (tidx >= ts).astype(jnp.float32)                             # (T,1,1)
    n_sel = (T - ts).astype(jnp.float32)

    diff = vmean - rewards
    d = sel * diff                                                     # shared term
    mse_loss = jnp.sum(d * diff, axis=0) / n_sel                       # (1,1)
    prob_sum = -jnp.sum(d, axis=0)                                     # sum(rewards - vmean)
    idx = jnp.clip(prob_sum, 0.0, 8.0).astype(jnp.int32)               # (1,1), == .long()

    # ---- Categorical log_prob(idx) = logits[idx] - logsumexp(logits)
    m_d = jnp.max(dist, axis=1, keepdims=True)                         # (1,1)
    lse_d = m_d + jnp.log(jnp.sum(jnp.exp(dist - m_d), axis=1, keepdims=True))
    kcol = lax.broadcasted_iota(jnp.int32, (1, K), 1)
    picked_d = jnp.sum(jnp.where(kcol == idx, dist, 0.0), axis=1, keepdims=True)
    log_prob_loss = lse_d - picked_d                                   # (1,1)

    loss_ref[...] = mse_loss + log_prob_loss + ce_out


@functools.partial(jax.jit, static_argnames=("gamma",))
def reinforced_losses_forward(timestamp, classifications, output_logits, labels,
                              values, dist_logits, *, gamma=GAMMA):
    T, B, C = classifications.shape
    V = values.shape[-1]
    K = dist_logits.shape[-1]
    assert V <= C, "values feature dim must fit within the class dim for packing"
    assert 9 <= K <= C, "Categorical needs >= 9 logits (advantage clamp) and K <= C"

    # Pack everything into a single lane-dense f32 buffer -> one VMEM DMA.
    out_row = output_logits.astype(jnp.float32)[None]                         # (1,B,C)
    cls = classifications.astype(jnp.float32)                                 # (T,B,C)
    vals = jnp.pad(values.astype(jnp.float32), ((0, 0), (0, 0), (0, C - V)))  # (T,B,C)
    dist_row = jnp.zeros((1, B, C), jnp.float32).at[0, 0, :K].set(
        dist_logits.reshape(-1).astype(jnp.float32))
    oh_row = jax.nn.one_hot(labels, C, dtype=jnp.float32)[None]               # (1,B,C)
    packed = jnp.concatenate([out_row, cls, vals, dist_row, oh_row], axis=0)  # (2T+3,B,C)

    kernel = functools.partial(reinforced_loss_kernel, V=V, K=K, gamma=float(gamma))

    loss = pl.pallas_call(
        kernel,
        out_shape=jax.ShapeDtypeStruct((1, 1), jnp.float32),
        in_specs=[
            pl.BlockSpec(memory_space=pltpu.MemorySpace.SMEM),   # timestamp scalar
            pl.BlockSpec(memory_space=pltpu.MemorySpace.VMEM),   # packed tensor buffer
        ],
        out_specs=pl.BlockSpec(memory_space=pltpu.MemorySpace.VMEM),
    )(timestamp.astype(jnp.int32), packed)
    return loss


def reference_loss(timestamp, classifications, output_logits, labels, values,
                   dist_logits, *, iterations=ITERATIONS, gamma=GAMMA):
    """Pure-JAX mirror of the PyTorch forward (for correctness checking)."""
    T = classifications.shape[0]
    assert T == iterations
    logp = jax.nn.log_softmax(classifications, axis=-1)
    ce = -jnp.mean(jnp.take_along_axis(logp, labels[None, :, None], axis=-1)[..., 0],
                   axis=-1)                                # (T,)
    logp_out = jax.nn.log_softmax(output_logits, axis=-1)
    ce_out = -jnp.mean(jnp.take_along_axis(logp_out, labels[:, None], axis=-1))

    rewards = [jnp.float32(0.0)]
    for t in range(1, T):
        rewards.append(jnp.float32(gamma ** (iterations - t)) * (ce[t - 1] - ce[t]))
    rewards = jnp.stack(rewards)                           # (T,)
    vmean = jnp.mean(values, axis=(1, 2))                  # (T,)

    ts = int(np.asarray(timestamp)[0])
    v_s, r_s = vmean[ts:], rewards[ts:]
    mse_loss = jnp.mean((v_s - r_s) ** 2)
    prob = jnp.clip(jnp.sum(r_s - v_s), 0.0, 8.0)
    idx = prob.astype(jnp.int32)
    log_prob_loss = -jax.nn.log_softmax(dist_logits[0])[idx]
    return mse_loss + log_prob_loss + ce_out


if __name__ == "__main__":
    T, B, C, V, K = ITERATIONS, 8, 16, 4, 16
    key = jax.random.PRNGKey(0)
    kc, ko, kl, kv, kd, kt = jax.random.split(key, 6)

    classifications = jax.random.normal(kc, (T, B, C), jnp.float32)
    output_logits = jax.random.normal(ko, (B, C), jnp.float32)
    labels = jax.random.randint(kl, (B,), 0, C, jnp.int32)
    values = 0.1 * jax.random.normal(kv, (T, B, V), jnp.float32)
    dist_logits = jax.random.normal(kd, (1, K), jnp.float32)   # Categorical logits
    # torch.randint(low=1, high=iterations, size=(1,)) equivalent (host-side glue)
    timestamp = jax.random.randint(kt, (1,), 1, T, jnp.int32)

    loss = reinforced_losses_forward(timestamp, classifications, output_logits,
                                     labels, values, dist_logits)
    loss = jax.block_until_ready(loss)

    ref = reference_loss(timestamp, classifications, output_logits, labels,
                         values, dist_logits)
    assert np.allclose(np.asarray(loss)[0, 0], np.asarray(ref),
                       rtol=1e-4, atol=1e-4), (np.asarray(loss), np.asarray(ref))
    print("KERNEL_OK")
</pallas_src>

<mosaic_0001>
module attributes {stable_mosaic.version = 11 : i64} {
  func.func @reinforced_loss_kernel(%arg0: memref<1xi32, #tpu.memory_space<smem>>, %arg1: memref<19x8x16xf32, #tpu.memory_space<vmem>>, %arg2: memref<1x1xf32, #tpu.memory_space<vmem>>) attributes {dimension_semantics = [], scalar_prefetch = 0 : i64, scratch_operands = 0 : i64, tpu.core_type = #tpu.core_type<tc>} {
    %c0 = arith.constant 0 : index
    %c0_0 = arith.constant 0 : index
    %c0_1 = arith.constant 0 : index
    %0 = vector.load %arg1[%c0, %c0_0, %c0_1] : memref<19x8x16xf32, #tpu.memory_space<vmem>>, vector<19x8x16xf32>
    %1 = vector.extract_strided_slice %0 {offsets = [0, 0, 0], sizes = [9, 8, 16], strides = [1, 1, 1]} : vector<19x8x16xf32> to vector<9x8x16xf32>
    %2 = vector.extract_strided_slice %0 {offsets = [9, 0, 0], sizes = [8, 8, 16], strides = [1, 1, 1]} : vector<19x8x16xf32> to vector<8x8x16xf32>
    %3 = vector.extract_strided_slice %0 {offsets = [17, 0, 0], sizes = [1, 1, 16], strides = [1, 1, 1]} : vector<19x8x16xf32> to vector<1x1x16xf32>
    %4 = vector.shape_cast %3 : vector<1x1x16xf32> to vector<1x16xf32>
    %5 = vector.extract_strided_slice %0 {offsets = [18, 0, 0], sizes = [1, 8, 16], strides = [1, 1, 1]} : vector<19x8x16xf32> to vector<1x8x16xf32>
    %6 = vector.shape_cast %5 : vector<1x8x16xf32> to vector<8x16xf32>
    %cst = arith.constant dense<0xFF800000> : vector<9x8xf32>
    %7 = vector.multi_reduction <maximumf>, %1, %cst [2] : vector<9x8x16xf32> to vector<9x8xf32>
    %8 = vector.shape_cast %7 : vector<9x8xf32> to vector<9x8x1xf32>
    %9 = vector.broadcast %8 : vector<9x8x1xf32> to vector<9x8x16xf32>
    %10 = arith.subf %1, %9 : vector<9x8x16xf32>
    %11 = math.exp %10 : vector<9x8x16xf32>
    %cst_2 = arith.constant dense<0.000000e+00> : vector<9x8xf32>
    %12 = vector.multi_reduction <add>, %11, %cst_2 [2] : vector<9x8x16xf32> to vector<9x8xf32>
    %13 = vector.shape_cast %12 : vector<9x8xf32> to vector<9x8x1xf32>
    %14 = math.log %13 : vector<9x8x1xf32>
    %15 = arith.addf %8, %14 : vector<9x8x1xf32>
    %16 = vector.shape_cast %6 : vector<8x16xf32> to vector<1x8x16xf32>
    %17 = vector.broadcast %16 : vector<1x8x16xf32> to vector<9x8x16xf32>
    %18 = arith.mulf %1, %17 : vector<9x8x16xf32>
    %cst_3 = arith.constant dense<0.000000e+00> : vector<9x8xf32>
    %19 = vector.multi_reduction <add>, %18, %cst_3 [2] : vector<9x8x16xf32> to vector<9x8xf32>
    %20 = vector.shape_cast %19 : vector<9x8xf32> to vector<9x8x1xf32>
    %21 = arith.subf %15, %20 : vector<9x8x1xf32>
    %cst_4 = arith.constant dense<0.000000e+00> : vector<9x1xf32>
    %22 = vector.multi_reduction <add>, %21, %cst_4 [1] : vector<9x8x1xf32> to vector<9x1xf32>
    %23 = vector.shape_cast %22 : vector<9x1xf32> to vector<9x1x1xf32>
    %cst_5 = arith.constant 8.000000e+00 : f32
    %24 = vector.broadcast %cst_5 : f32 to vector<9x1x1xf32>
    %25 = arith.divf %23, %24 : vector<9x1x1xf32>
    %26 = vector.extract_strided_slice %25 {offsets = [0, 0, 0], sizes = [1, 1, 1], strides = [1, 1, 1]} : vector<9x1x1xf32> to vector<1x1x1xf32>
    %27 = vector.shape_cast %26 : vector<1x1x1xf32> to vector<1x1xf32>
    %28 = vector.extract_strided_slice %25 {offsets = [0, 0, 0], sizes = [8, 1, 1], strides = [1, 1, 1]} : vector<9x1x1xf32> to vector<8x1x1xf32>
    %29 = vector.extract_strided_slice %25 {offsets = [1, 0, 0], sizes = [8, 1, 1], strides = [1, 1, 1]} : vector<9x1x1xf32> to vector<8x1x1xf32>
    %30 = tpu.iota {dimensions = array<i32: 0>} : vector<8x1x1xi32>
    %c8_i32 = arith.constant 8 : i32
    %31 = vector.broadcast %c8_i32 : i32 to vector<8x1x1xi32>
    %32 = arith.subi %31, %30 : vector<8x1x1xi32>
    %33 = arith.sitofp %32 : vector<8x1x1xi32> to vector<8x1x1xf32>
    %cst_6 = arith.constant -0.0202027075 : f32
    %34 = vector.broadcast %cst_6 : f32 to vector<8x1x1xf32>
    %35 = arith.mulf %33, %34 : vector<8x1x1xf32>
    %36 = math.exp %35 : vector<8x1x1xf32>
    %c1_i32 = arith.constant 1 : i32
    %37 = vector.broadcast %c1_i32 : i32 to vector<8x1x1xi32>
    %38 = arith.cmpi sge, %30, %37 : vector<8x1x1xi32>
    %39 = arith.subf %28, %29 : vector<8x1x1xf32>
    %40 = arith.mulf %36, %39 : vector<8x1x1xf32>
    %cst_7 = arith.constant 0.000000e+00 : f32
    %41 = vector.broadcast %cst_7 : f32 to vector<8x1x1xf32>
    %42 = arith.select %38, %40, %41 : vector<8x1x1xi1>, vector<8x1x1xf32>
    %cst_8 = arith.constant dense<0.000000e+00> : vector<8x8xf32>
    %43 = vector.multi_reduction <add>, %2, %cst_8 [2] : vector<8x8x16xf32> to vector<8x8xf32>
    %44 = vector.shape_cast %43 : vector<8x8xf32> to vector<8x8x1xf32>
    %cst_9 = arith.constant dense<0.000000e+00> : vector<8x1xf32>
    %45 = vector.multi_reduction <add>, %44, %cst_9 [1] : vector<8x8x1xf32> to vector<8x1xf32>
    %46 = vector.shape_cast %45 : vector<8x1xf32> to vector<8x1x1xf32>
    %cst_10 = arith.constant 3.125000e-02 : f32
    %47 = vector.broadcast %cst_10 : f32 to vector<8x1x1xf32>
    %48 = arith.mulf %46, %47 : vector<8x1x1xf32>
    %c0_11 = arith.constant 0 : index
    %49 = memref.load %arg0[%c0_11] : memref<1xi32, #tpu.memory_space<smem>>
    %50 = vector.broadcast %49 : i32 to vector<8x1x1xi32>
    %51 = arith.cmpi sge, %30, %50 : vector<8x1x1xi32>
    %52 = arith.extui %51 : vector<8x1x1xi1> to vector<8x1x1xi32>
    %53 = arith.sitofp %52 : vector<8x1x1xi32> to vector<8x1x1xf32>
    %c8_i32_12 = arith.constant 8 : i32
    %54 = arith.subi %c8_i32_12, %49 : i32
    %55 = arith.sitofp %54 : i32 to f32
    %56 = arith.subf %48, %42 : vector<8x1x1xf32>
    %57 = arith.mulf %53, %56 : vector<8x1x1xf32>
    %58 = arith.mulf %57, %56 : vector<8x1x1xf32>
    %cst_13 = arith.constant dense<0.000000e+00> : vector<1x1xf32>
    %59 = vector.multi_reduction <add>, %58, %cst_13 [0] : vector<8x1x1xf32> to vector<1x1xf32>
    %60 = vector.broadcast %55 : f32 to vector<1x1xf32>
    %61 = arith.divf %59, %60 : vector<1x1xf32>
    %cst_14 = arith.constant dense<0.000000e+00> : vector<1x1xf32>
    %62 = vector.multi_reduction <add>, %57, %cst_14 [0] : vector<8x1x1xf32> to vector<1x1xf32>
    %cst_15 = arith.constant 0.000000e+00 : f32
    %63 = vector.broadcast %cst_15 : f32 to vector<1x1xf32>
    %64 = arith.subf %63, %62 : vector<1x1xf32>
    %cst_16 = arith.constant 0.000000e+00 : f32
    %cst_17 = arith.constant 8.000000e+00 : f32
    %65 = vector.broadcast %cst_16 : f32 to vector<1x1xf32>
    %66 = arith.maximumf %65, %64 : vector<1x1xf32>
    %67 = vector.broadcast %cst_17 : f32 to vector<1x1xf32>
    %68 = arith.minimumf %67, %66 : vector<1x1xf32>
    %69 = arith.fptosi %68 : vector<1x1xf32> to vector<1x1xi32>
    %cst_18 = arith.constant dense<0xFF800000> : vector<1xf32>
    %70 = vector.multi_reduction <maximumf>, %4, %cst_18 [1] : vector<1x16xf32> to vector<1xf32>
    %71 = vector.shape_cast %70 : vector<1xf32> to vector<1x1xf32>
    %72 = vector.broadcast %71 : vector<1x1xf32> to vector<1x16xf32>
    %73 = arith.subf %4, %72 : vector<1x16xf32>
    %74 = math.exp %73 : vector<1x16xf32>
    %cst_19 = arith.constant dense<0.000000e+00> : vector<1xf32>
    %75 = vector.multi_reduction <add>, %74, %cst_19 [1] : vector<1x16xf32> to vector<1xf32>
    %76 = vector.shape_cast %75 : vector<1xf32> to vector<1x1xf32>
    %77 = math.log %76 : vector<1x1xf32>
    %78 = arith.addf %71, %77 : vector<1x1xf32>
    %79 = tpu.iota {dimensions = array<i32: 1>} : vector<1x16xi32>
    %80 = vector.broadcast %69 : vector<1x1xi32> to vector<1x16xi32>
    %81 = arith.cmpi eq, %79, %80 : vector<1x16xi32>
    %cst_20 = arith.constant 0.000000e+00 : f32
    %82 = vector.broadcast %cst_20 : f32 to vector<1x16xf32>
    %83 = arith.select %81, %4, %82 : vector<1x16xi1>, vector<1x16xf32>
    %cst_21 = arith.constant dense<0.000000e+00> : vector<1xf32>
    %84 = vector.multi_reduction <add>, %83, %cst_21 [1] : vector<1x16xf32> to vector<1xf32>
    %85 = vector.shape_cast %84 : vector<1xf32> to vector<1x1xf32>
    %86 = arith.subf %78, %85 : vector<1x1xf32>
    %87 = arith.addf %61, %86 : vector<1x1xf32>
    %88 = arith.addf %87, %27 : vector<1x1xf32>
    %c0_22 = arith.constant 0 : index
    %c0_23 = arith.constant 0 : index
    %89 = vector.load %arg2[%c0_22, %c0_23] : memref<1x1xf32, #tpu.memory_space<vmem>>, vector<1x1xf32>
    tpu.vector_store %arg2[%c0_22, %c0_23], %88 {strides = array<i32>} : memref<1x1xf32, #tpu.memory_space<vmem>>, vector<1x1xf32>,
    return
  }
}

</mosaic_0001>

<llo_original>
// kernel: reinforced_losses_forward.1
$region0: #{reinforced_losses_forward.1}
  #allocation0 [shape = 'u32[]', space=smem, size = 0x4, offset = 0x4, fixed_abs, tag = 'smem constant byte address 0x4 - core index']
  #allocation1 [shape = 'u32[144,128]{1,0:T(1,128)}', space=vmem, size = 0x12000, scoped, tag = 'internal scratch']
  #allocation2 [shape = 's32[1]{0:T(128)S(6)}', space=smem, size = 0x200, scoped, tag = 'scoped memory for reinforced_losses_forward.1']
  %s0 = inlined_call_operand.<no memory space> [shape: s32[1], index: 0, kind: input, shape index: {}]
  %s1 = inlined_call_operand.vmem [shape: f32[19,8,16], index: 1, kind: input, shape index: {}]
  %s2 = inlined_call_operand.hbm [shape: f32[1,1], index: 2, kind: output, shape index: {}]
  %s3 = sld [smem:[#allocation0]]
  $region18: #{reinforced_losses_forward.1} parent=0
    _
  %s5 = ssub.s32 1, %s3
  %s6 = scalar_select 0, %s5, %s3
  %7 = sst [smem:[#allocation2]] %s0
  $region1: #{reinforced_losses_forward.1} parent=0
    #allocation3 [shape = 'u8[512]{0}', space=vmem, size = 0x400, scoped, tag = 'output window, operand 0, single buffered']
    #allocation4 [shape = 's32[1]{0}', space=sflag, size = 0x4, scoped, tag = 'scoped memory for reinforced_losses_forward.1']
    %8 = vsyncpa [#allocation4], 0
    // Predicated region
    $region2: #{reinforced_losses_forward.1} parent=1 // pred_check
      _
    $region3: #{reinforced_losses_forward.1} parent=1 // pred_check_branch
      %10 = sbr.rel (0) target = $region5
    $region4: #{reinforced_losses_forward.1} parent=1 // pred_region
      _
    $region5: #{reinforced_losses_forward.1} parent=1 // pred_fallthru
      _
    // Predicated region
    $region6: #{reinforced_losses_forward.1} parent=1 // pred_check
      _
    $region7: #{reinforced_losses_forward.1} parent=1 // pred_check_branch
      %12 = sbr.rel (0) target = $region9
    $region8: #{reinforced_losses_forward.1} parent=1 // pred_region
      _
    $region9: #{reinforced_losses_forward.1} parent=1 // pred_fallthru
      _
    %v13 = vld [vmem:[%s1] sm:$0xff]
    %v14 = vld [vmem:[%s1 + $0x8] sm:$0xff]
    %v15 = vld [vmem:[%s1 + $0x10] sm:$0xff]
    %v16 = vld [vmem:[%s1 + $0x18] sm:$0xff]
    %v17 = vld [vmem:[%s1 + $0x20] sm:$0xff]
    %v18 = vld [vmem:[%s1 + $0x28] sm:$0xff]
    %v19 = vld [vmem:[%s1 + $0x30] sm:$0xff]
    %v20 = vld [vmem:[%s1 + $0x38] sm:$0xff]
    %v21 = vld [vmem:[%s1 + $0x40] sm:$0xff]
    %v22 = vld [vmem:[%s1 + $0x48] sm:$0xff]
    %v23 = vld [vmem:[%s1 + $0x50] sm:$0xff]
    %v24 = vld [vmem:[%s1 + $0x58] sm:$0xff]
    %v25 = vld [vmem:[%s1 + $0x60] sm:$0xff]
    %v26 = vld [vmem:[%s1 + $0x68] sm:$0xff]
    %v27 = vld [vmem:[%s1 + $0x70] sm:$0xff]
    %v28 = vld [vmem:[%s1 + $0x78] sm:$0xff]
    %v29 = vld [vmem:[%s1 + $0x80] sm:$0xff]
    %v30 = vld [vmem:[%s1 + $0x88] sm:$0xff]
    %v31 = vld [vmem:[%s1 + $0x90] sm:$0xff]
    %vm32 = vcmask 130048
    %v33 = vsel %vm32, %v13, -inf
    %34 = vmax.xlane.f32.xlu0 %v33
    %v35 = vpop.xlane.xlu0 %34
    %v36 = vsel %vm32, %v14, -inf
    %37 = vmax.xlane.f32.xlu0 %v36
    %v38 = vpop.xlane.xlu0 %37
    %v39 = vsel %vm32, %v15, -inf
    %40 = vmax.xlane.f32.xlu0 %v39
    %v41 = vpop.xlane.xlu0 %40
    %v42 = vsel %vm32, %v16, -inf
    %43 = vmax.xlane.f32.xlu0 %v42
    %v44 = vpop.xlane.xlu0 %43
    %v45 = vsel %vm32, %v17, -inf
    %46 = vmax.xlane.f32.xlu0 %v45
    %v47 = vpop.xlane.xlu0 %46
    %v48 = vsel %vm32, %v18, -inf
    %49 = vmax.xlane.f32.xlu0 %v48
    %v50 = vpop.xlane.xlu0 %49
    %v51 = vsel %vm32, %v19, -inf
    %52 = vmax.xlane.f32.xlu0 %v51
    %v53 = vpop.xlane.xlu0 %52
    %v54 = vsel %vm32, %v20, -inf
    %55 = vmax.xlane.f32.xlu0 %v54
    %v56 = vpop.xlane.xlu0 %55
    %v57 = vsel %vm32, %v21, -inf
    %58 = vmax.xlane.f32.xlu0 %v57
    %v59 = vpop.xlane.xlu0 %58
    %v60 = vsub.f32 %v13, %v35
    %v61 = vsub.f32 %v14, %v38
    %v62 = vsub.f32 %v15, %v41
    %v63 = vsub.f32 %v16, %v44
    %v64 = vsub.f32 %v17, %v47
    %v65 = vsub.f32 %v18, %v50
    %v66 = vsub.f32 %v19, %v53
    %v67 = vsub.f32 %v20, %v56
    %v68 = vsub.f32 %v21, %v59
    %v69 = vmul.f32 %v60, 1.442695
    %v70 = vpow.pop %v69
    %v71 = vmul.f32 %v61, 1.442695
    %v72 = vpow.pop %v71
    %v73 = vmul.f32 %v62, 1.442695
    %v74 = vpow.pop %v73
    %v75 = vmul.f32 %v63, 1.442695
    %v76 = vpow.pop %v75
    %v77 = vmul.f32 %v64, 1.442695
    %v78 = vpow.pop %v77
    %v79 = vmul.f32 %v65, 1.442695
    %v80 = vpow.pop %v79
    %v81 = vmul.f32 %v66, 1.442695
    %v82 = vpow.pop %v81
    %v83 = vmul.f32 %v67, 1.442695
    %v84 = vpow.pop %v83
    %v85 = vmul.f32 %v68, 1.442695
    %v86 = vpow.pop %v85
    %v87 = vsel %vm32, %v70, 0.0
    %88 = vadd.xlane.f32.xlu0 %v87
    %v89 = vpop.xlane.xlu0 %88
    %v90 = vsel %vm32, %v72, 0.0
    %91 = vadd.xlane.f32.xlu0 %v90
    %v92 = vpop.xlane.xlu0 %91
    %v93 = vsel %vm32, %v74, 0.0
    %94 = vadd.xlane.f32.xlu0 %v93
    %v95 = vpop.xlane.xlu0 %94
    %v96 = vsel %vm32, %v76, 0.0
    %97 = vadd.xlane.f32.xlu0 %v96
    %v98 = vpop.xlane.xlu0 %97
    %v99 = vsel %vm32, %v78, 0.0
    %100 = vadd.xlane.f32.xlu0 %v99
    %v101 = vpop.xlane.xlu0 %100
    %v102 = vsel %vm32, %v80, 0.0
    %103 = vadd.xlane.f32.xlu0 %v102
    %v104 = vpop.xlane.xlu0 %103
    %v105 = vsel %vm32, %v82, 0.0
    %106 = vadd.xlane.f32.xlu0 %v105
    %v107 = vpop.xlane.xlu0 %106
    %v108 = vsel %vm32, %v84, 0.0
    %109 = vadd.xlane.f32.xlu0 %v108
    %v110 = vpop.xlane.xlu0 %109
    %v111 = vsel %vm32, %v86, 0.0
    %112 = vadd.xlane.f32.xlu0 %v111
    %v113 = vpop.xlane.xlu0 %112
    %v114 = vlog2.pop %v89
    %v115 = vmul.f32 %v114, 0.6931472
    %v116 = vlog2.pop %v92
    %v117 = vmul.f32 %v116, 0.6931472
    %v118 = vlog2.pop %v95
    %v119 = vmul.f32 %v118, 0.6931472
    %v120 = vlog2.pop %v98
    %v121 = vmul.f32 %v120, 0.6931472
    %v122 = vlog2.pop %v101
    %v123 = vmul.f32 %v122, 0.6931472
    %v124 = vlog2.pop %v104
    %v125 = vmul.f32 %v124, 0.6931472
    %v126 = vlog2.pop %v107
    %v127 = vmul.f32 %v126, 0.6931472
    %v128 = vlog2.pop %v110
    %v129 = vmul.f32 %v128, 0.6931472
    %v130 = vlog2.pop %v113
    %v131 = vmul.f32 %v130, 0.6931472
    %v132 = vadd.f32 %v35, %v115
    %v133 = vadd.f32 %v38, %v117
    %v134 = vadd.f32 %v41, %v119
    %v135 = vadd.f32 %v44, %v121
    %v136 = vadd.f32 %v47, %v123
    %v137 = vadd.f32 %v50, %v125
    %v138 = vadd.f32 %v53, %v127
    %v139 = vadd.f32 %v56, %v129
    %v140 = vadd.f32 %v59, %v131
    %v141 = vmul.f32 %v13, %v31
    %v142 = vmul.f32 %v14, %v31
    %v143 = vmul.f32 %v15, %v31
    %v144 = vmul.f32 %v16, %v31
    %v145 = vmul.f32 %v17, %v31
    %v146 = vmul.f32 %v18, %v31
    %v147 = vmul.f32 %v19, %v31
    %v148 = vmul.f32 %v20, %v31
    %v149 = vmul.f32 %v21, %v31
    %v150 = vsel %vm32, %v141, 0.0
    %151 = vadd.xlane.f32.xlu0 %v150
    %v152 = vpop.xlane.xlu0 %151
    %v153 = vsel %vm32, %v142, 0.0
    %154 = vadd.xlane.f32.xlu0 %v153
    %v155 = vpop.xlane.xlu0 %154
    %v156 = vsel %vm32, %v143, 0.0
    %157 = vadd.xlane.f32.xlu0 %v156
    %v158 = vpop.xlane.xlu0 %157
    %v159 = vsel %vm32, %v144, 0.0
    %160 = vadd.xlane.f32.xlu0 %v159
    %v161 = vpop.xlane.xlu0 %160
    %v162 = vsel %vm32, %v145, 0.0
    %163 = vadd.xlane.f32.xlu0 %v162
    %v164 = vpop.xlane.xlu0 %163
    %v165 = vsel %vm32, %v146, 0.0
    %166 = vadd.xlane.f32.xlu0 %v165
    %v167 = vpop.xlane.xlu0 %166
    %v168 = vsel %vm32, %v147, 0.0
    %169 = vadd.xlane.f32.xlu0 %v168
    %v170 = vpop.xlane.xlu0 %169
    %v171 = vsel %vm32, %v148, 0.0
    %172 = vadd.xlane.f32.xlu0 %v171
    %v173 = vpop.xlane.xlu0 %172
    %v174 = vsel %vm32, %v149, 0.0
    %175 = vadd.xlane.f32.xlu0 %v174
    %v176 = vpop.xlane.xlu0 %175
    %v177 = vsub.f32 %v132, %v152
    %v178 = vsub.f32 %v133, %v155
    %v179 = vsub.f32 %v134, %v158
    %v180 = vsub.f32 %v135, %v161
    %v181 = vsub.f32 %v136, %v164
    %v182 = vsub.f32 %v137, %v167
    %v183 = vsub.f32 %v138, %v170
    %v184 = vsub.f32 %v139, %v173
    %v185 = vsub.f32 %v140, %v176
    %v186 = vrot.slane %v177, 4
    %v187 = vadd.f32 %v177, %v186
    %v188 = vrot.slane %v187, 2
    %v189 = vadd.f32 %v187, %v188
    %v190 = vrot.slane %v189, 1
    %v191 = vadd.f32 %v189, %v190
    %v192 = vrot.slane %v178, 4
    %v193 = vadd.f32 %v178, %v192
    %v194 = vrot.slane %v193, 2
    %v195 = vadd.f32 %v193, %v194
    %v196 = vrot.slane %v195, 1
    %v197 = vadd.f32 %v195, %v196
    %v198 = vrot.slane %v179, 4
    %v199 = vadd.f32 %v179, %v198
    %v200 = vrot.slane %v199, 2
    %v201 = vadd.f32 %v199, %v200
    %v202 = vrot.slane %v201, 1
    %v203 = vadd.f32 %v201, %v202
    %v204 = vrot.slane %v180, 4
    %v205 = vadd.f32 %v180, %v204
    %v206 = vrot.slane %v205, 2
    %v207 = vadd.f32 %v205, %v206
    %v208 = vrot.slane %v207, 1
    %v209 = vadd.f32 %v207, %v208
    %v210 = vrot.slane %v181, 4
    %v211 = vadd.f32 %v181, %v210
    %v212 = vrot.slane %v211, 2
    %v213 = vadd.f32 %v211, %v212
    %v214 = vrot.slane %v213, 1
    %v215 = vadd.f32 %v213, %v214
    %v216 = vrot.slane %v182, 4
    %v217 = vadd.f32 %v182, %v216
    %v218 = vrot.slane %v217, 2
    %v219 = vadd.f32 %v217, %v218
    %v220 = vrot.slane %v219, 1
    %v221 = vadd.f32 %v219, %v220
    %v222 = vrot.slane %v183, 4
    %v223 = vadd.f32 %v183, %v222
    %v224 = vrot.slane %v223, 2
    %v225 = vadd.f32 %v223, %v224
    %v226 = vrot.slane %v225, 1
    %v227 = vadd.f32 %v225, %v226
    %v228 = vrot.slane %v184, 4
    %v229 = vadd.f32 %v184, %v228
    %v230 = vrot.slane %v229, 2
    %v231 = vadd.f32 %v229, %v230
    %v232 = vrot.slane %v231, 1
    %v233 = vadd.f32 %v231, %v232
    %v234 = vrot.slane %v185, 4
    %v235 = vadd.f32 %v185, %v234
    %v236 = vrot.slane %v235, 2
    %v237 = vadd.f32 %v235, %v236
    %v238 = vrot.slane %v237, 1
    %v239 = vadd.f32 %v237, %v238
    %v240 = vrcp.pop 8.0
    %v241 = vmul.f32 %v191, %v240
    %v242 = vmul.f32 %v197, %v240
    %v243 = vmul.f32 %v203, %v240
    %v244 = vmul.f32 %v209, %v240
    %v245 = vmul.f32 %v215, %v240
    %v246 = vmul.f32 %v221, %v240
    %v247 = vmul.f32 %v227, %v240
    %v248 = vmul.f32 %v233, %v240
    %v249 = vmul.f32 %v239, %v240
    %v250 = vcvt.s32.f32 7
    %v251 = vcvt.s32.f32 6
    %v252 = vcvt.s32.f32 5
    %v253 = vcvt.s32.f32 4
    %v254 = vcvt.s32.f32 3
    %v255 = vcvt.s32.f32 2
    %v256 = vcvt.s32.f32 1
    %v257 = vmul.f32 %v250, -0.020202707
    %v258 = vmul.f32 %v251, -0.020202707
    %v259 = vmul.f32 %v252, -0.020202707
    %v260 = vmul.f32 %v253, -0.020202707
    %v261 = vmul.f32 %v254, -0.020202707
    %v262 = vmul.f32 %v255, -0.020202707
    %v263 = vmul.f32 %v256, -0.020202707
    %v264 = vmul.f32 %v257, 1.442695
    %v265 = vpow.pop %v264
    %v266 = vmul.f32 %v258, 1.442695
    %v267 = vpow.pop %v266
    %v268 = vmul.f32 %v259, 1.442695
    %v269 = vpow.pop %v268
    %v270 = vmul.f32 %v260, 1.442695
    %v271 = vpow.pop %v270
    %v272 = vmul.f32 %v261, 1.442695
    %v273 = vpow.pop %v272
    %v274 = vmul.f32 %v262, 1.442695
    %v275 = vpow.pop %v274
    %v276 = vmul.f32 %v263, 1.442695
    %v277 = vpow.pop %v276
    %v278 = vsub.f32 %v242, %v243
    %v279 = vsub.f32 %v243, %v244
    %v280 = vsub.f32 %v244, %v245
    %v281 = vsub.f32 %v245, %v246
    %v282 = vsub.f32 %v246, %v247
    %v283 = vsub.f32 %v247, %v248
    %v284 = vsub.f32 %v248, %v249
    %v285 = vmul.f32 %v265, %v278
    %v286 = vmul.f32 %v267, %v279
    %v287 = vmul.f32 %v269, %v280
    %v288 = vmul.f32 %v271, %v281
    %v289 = vmul.f32 %v273, %v282
    %v290 = vmul.f32 %v275, %v283
    %v291 = vmul.f32 %v277, %v284
    %v292 = vsel %vm32, %v22, 0.0
    %293 = vadd.xlane.f32.xlu0 %v292
    %v294 = vpop.xlane.xlu0 %293
    %v295 = vsel %vm32, %v23, 0.0
    %296 = vadd.xlane.f32.xlu0 %v295
    %v297 = vpop.xlane.xlu0 %296
    %v298 = vsel %vm32, %v24, 0.0
    %299 = vadd.xlane.f32.xlu0 %v298
    %v300 = vpop.xlane.xlu0 %299
    %v301 = vsel %vm32, %v25, 0.0
    %302 = vadd.xlane.f32.xlu0 %v301
    %v303 = vpop.xlane.xlu0 %302
    %v304 = vsel %vm32, %v26, 0.0
    %305 = vadd.xlane.f32.xlu0 %v304
    %v306 = vpop.xlane.xlu0 %305
    %v307 = vsel %vm32, %v27, 0.0
    %308 = vadd.xlane.f32.xlu0 %v307
    %v309 = vpop.xlane.xlu0 %308
    %v310 = vsel %vm32, %v28, 0.0
    %311 = vadd.xlane.f32.xlu0 %v310
    %v312 = vpop.xlane.xlu0 %311
    %v313 = vsel %vm32, %v29, 0.0
    %314 = vadd.xlane.f32.xlu0 %v313
    %v315 = vpop.xlane.xlu0 %314
    %v316 = vrot.slane %v294, 4
    %v317 = vadd.f32 %v294, %v316
    %v318 = vrot.slane %v317, 2
    %v319 = vadd.f32 %v317, %v318
    %v320 = vrot.slane %v319, 1
    %v321 = vadd.f32 %v319, %v320
    %v322 = vrot.slane %v297, 4
    %v323 = vadd.f32 %v297, %v322
    %v324 = vrot.slane %v323, 2
    %v325 = vadd.f32 %v323, %v324
    %v326 = vrot.slane %v325, 1
    %v327 = vadd.f32 %v325, %v326
    %v328 = vrot.slane %v300, 4
    %v329 = vadd.f32 %v300, %v328
    %v330 = vrot.slane %v329, 2
    %v331 = vadd.f32 %v329, %v330
    %v332 = vrot.slane %v331, 1
    %v333 = vadd.f32 %v331, %v332
    %v334 = vrot.slane %v303, 4
    %v335 = vadd.f32 %v303, %v334
    %v336 = vrot.slane %v335, 2
    %v337 = vadd.f32 %v335, %v336
    %v338 = vrot.slane %v337, 1
    %v339 = vadd.f32 %v337, %v338
    %v340 = vrot.slane %v306, 4
    %v341 = vadd.f32 %v306, %v340
    %v342 = vrot.slane %v341, 2
    %v343 = vadd.f32 %v341, %v342
    %v344 = vrot.slane %v343, 1
    %v345 = vadd.f32 %v343, %v344
    %v346 = vrot.slane %v309, 4
    %v347 = vadd.f32 %v309, %v346
    %v348 = vrot.slane %v347, 2
    %v349 = vadd.f32 %v347, %v348
    %v350 = vrot.slane %v349, 1
    %v351 = vadd.f32 %v349, %v350
    %v352 = vrot.slane %v312, 4
    %v353 = vadd.f32 %v312, %v352
    %v354 = vrot.slane %v353, 2
    %v355 = vadd.f32 %v353, %v354
    %v356 = vrot.slane %v355, 1
    %v357 = vadd.f32 %v355, %v356
    %v358 = vrot.slane %v315, 4
    %v359 = vadd.f32 %v315, %v358
    %v360 = vrot.slane %v359, 2
    %v361 = vadd.f32 %v359, %v360
    %v362 = vrot.slane %v361, 1
    %v363 = vadd.f32 %v361, %v362
    %v364 = vmul.f32 %v321, 0.03125
    %v365 = vmul.f32 %v327, 0.03125
    %v366 = vmul.f32 %v333, 0.03125
    %v367 = vmul.f32 %v339, 0.03125
    %v368 = vmul.f32 %v345, 0.03125
    %v369 = vmul.f32 %v351, 0.03125
    %v370 = vmul.f32 %v357, 0.03125
    %v371 = vmul.f32 %v363, 0.03125
    %s372 = sld [smem:[#allocation2]]
    %v373 = vstv %s372
    %vm374 = vcmp.le.s32.totalorder %v373, 0
    %vm375 = vcmp.le.s32.totalorder %v373, 1
    %vm376 = vcmp.le.s32.totalorder %v373, 2
    %vm377 = vcmp.le.s32.totalorder %v373, 3
    %vm378 = vcmp.le.s32.totalorder %v373, 4
    %vm379 = vcmp.le.s32.totalorder %v373, 5
    %vm380 = vcmp.le.s32.totalorder %v373, 6
    %vm381 = vcmp.le.s32.totalorder %v373, 7
    %v382 = vsel %vm374, 1, 0
    %v383 = vsel %vm375, 1, 0
    %v384 = vsel %vm376, 1, 0
    %v385 = vsel %vm377, 1, 0
    %v386 = vsel %vm378, 1, 0
    %v387 = vsel %vm379, 1, 0
    %v388 = vsel %vm380, 1, 0
    %v389 = vsel %vm381, 1, 0
    %v390 = vcvt.s32.f32 %v382
    %v391 = vcvt.s32.f32 %v383
    %v392 = vcvt.s32.f32 %v384
    %v393 = vcvt.s32.f32 %v385
    %v394 = vcvt.s32.f32 %v386
    %v395 = vcvt.s32.f32 %v387
    %v396 = vcvt.s32.f32 %v388
    %v397 = vcvt.s32.f32 %v389
    %s398 = ssub.s32 8, %s372
    %s399 = scvt.s32.f32 %s398
    %v400 = vsub.f32 %v365, %v285
    %v401 = vsub.f32 %v366, %v286
    %v402 = vsub.f32 %v367, %v287
    %v403 = vsub.f32 %v368, %v288
    %v404 = vsub.f32 %v369, %v289
    %v405 = vsub.f32 %v370, %v290
    %v406 = vsub.f32 %v371, %v291
    %v407 = vmul.f32 %v390, %v364
    %v408 = vmul.f32 %v391, %v400
    %v409 = vmul.f32 %v392, %v401
    %v410 = vmul.f32 %v393, %v402
    %v411 = vmul.f32 %v394, %v403
    %v412 = vmul.f32 %v395, %v404
    %v413 = vmul.f32 %v396, %v405
    %v414 = vmul.f32 %v397, %v406
    %v415 = vmul.f32 %v407, %v364
    %v416 = vmul.f32 %v408, %v400
    %v417 = vmul.f32 %v409, %v401
    %v418 = vmul.f32 %v410, %v402
    %v419 = vmul.f32 %v411, %v403
    %v420 = vmul.f32 %v412, %v404
    %v421 = vmul.f32 %v413, %v405
    %v422 = vmul.f32 %v414, %v406
    %v423 = vadd.f32 %v415, %v416
    %v424 = vadd.f32 %v423, %v417
    %v425 = vadd.f32 %v424, %v418
    %v426 = vadd.f32 %v425, %v419
    %v427 = vadd.f32 %v426, %v420
    %v428 = vadd.f32 %v427, %v421
    %v429 = vadd.f32 %v428, %v422
    %v430 = vstv %s399
    %v431 = vrcp.pop %v430
    %v432 = vmul.f32 %v429, %v431
    %v433 = vadd.f32 %v407, %v408
    %v434 = vadd.f32 %v433, %v409
    %v435 = vadd.f32 %v434, %v410
    %v436 = vadd.f32 %v435, %v411
    %v437 = vadd.f32 %v436, %v412
    %v438 = vadd.f32 %v437, %v413
    %v439 = vadd.f32 %v438, %v414
    %v440 = vsub.f32 0.0, %v439
    %v441 = vmax.f32 %v440, 0.0
    %v442 = vmin.f32 %v441, 8.0
    %v443 = vcvt.f32.s32.to.zero.pseudo %v442
    %vm444 = vcmask 122880
    %v445 = vsel %vm444, %v30, -inf
    %446 = vmax.xlane.f32.xlu0 %v445
    %v447 = vpop.xlane.xlu0 %446
    %v448 = vsub.f32 %v30, %v447
    %v449 = vmul.f32 %v448, 1.442695
    %v450 = vpow.pop %v449
    %v451 = vsel %vm444, %v450, 0.0
    %452 = vadd.xlane.f32.xlu0 %v451
    %v453 = vpop.xlane.xlu0 %452
    %v454 = vlog2.pop %v453
    %v455 = vmul.f32 %v454, 0.6931472
    %v456 = vadd.f32 %v447, %v455
    %v457 = vlaneseq
    %v458 = vand.u32 %v457, 127
    %vm459 = vcmp.eq.s32.totalorder %v458, %v443
    %v460 = vsel %vm459, %v30, 0.0
    %v461 = vsel %vm444, %v460, 0.0
    %462 = vadd.xlane.f32.xlu0 %v461
    %v463 = vpop.xlane.xlu0 %462
    %v464 = vsub.f32 %v456, %v463
    %v465 = vadd.f32 %v432, %v464
    %v466 = vadd.f32 %v465, %v241
    %vm467 = vcmask 0
    %468 = vst.msk [vmem:[#allocation3] sm:$0x1] %vm467, %v466
    // Predicated region
    $region10: #{reinforced_losses_forward.1} parent=1 // pred_check
      _
    $region11: #{reinforced_losses_forward.1} parent=1 // pred_check_branch
      %470 = sbr.rel (0) target = $region13
    $region12: #{reinforced_losses_forward.1} parent=1 // pred_region
      %s472 = ssub.s32 16, 16
      %473 = vsyncadd [#allocation4], %s472
      %s475 = sshll.u32 [#allocation3], 4
      %s476 = int_to_ptr.vmem [resolvable:$true] %s475
      %478 = dma.vmem_to_hbm [thread:$0]  %s476, 16, %s2, [#allocation4]
    $region13: #{reinforced_losses_forward.1} parent=1 // pred_fallthru
      _
    // Predicated region
    $region14: #{reinforced_losses_forward.1} parent=1 // pred_check
      _
    $region15: #{reinforced_losses_forward.1} parent=1 // pred_check_branch
      %480 = sbr.rel (0) target = $region17
    $region16: #{reinforced_losses_forward.1} parent=1 // pred_region
      %481 = dma.done [#allocation4], 16
    $region17: #{reinforced_losses_forward.1} parent=1 // pred_fallthru
      _
    %482 = vsyncpa [#allocation4], 1

</llo_original>
